<compile_context>
chip_gen: v5e
topology: v5e:2x2
jax: 0.10.0
libtpu: 0.0.40
codegen_flags: <defaults>
</compile_context>

<pallas_src>
import jax
import jax.numpy as jnp
from jax import lax
from jax.experimental import pallas as pl
from jax.experimental.pallas import tpu as pltpu


# ----------------------------------------------------------------------------
# Kernel 1: fused projector + predictor MLPs (bf16 MXU operands, f32 accumulate)
#   proj = Linear2_p(ReLU(Linear1_p(x)))
#   pred = Linear2_q(ReLU(Linear1_q(proj)))
# ----------------------------------------------------------------------------
def _mlp_proj_pred_kernel(x_ref,
                          w1p_ref, b1p_ref, w2p_ref, b2p_ref,
                          w1q_ref, b1q_ref, w2q_ref, b2q_ref,
                          proj_ref, pred_ref):
    x = x_ref[...]                                            # (tile_n, C)
    h1 = jnp.dot(x, w1p_ref[...],
                 preferred_element_type=jnp.float32) + b1p_ref[...]
    h1 = jnp.maximum(h1, 0.0)                                 # f32 elementwise
    proj = jnp.dot(h1.astype(w2p_ref.dtype), w2p_ref[...],
                   preferred_element_type=jnp.float32) + b2p_ref[...]
    h2 = jnp.dot(proj.astype(w1q_ref.dtype), w1q_ref[...],
                 preferred_element_type=jnp.float32) + b1q_ref[...]
    h2 = jnp.maximum(h2, 0.0)
    pred = jnp.dot(h2.astype(w2q_ref.dtype), w2q_ref[...],
                   preferred_element_type=jnp.float32) + b2q_ref[...]
    proj_ref[...] = proj.astype(proj_ref.dtype)
    pred_ref[...] = pred.astype(pred_ref.dtype)


def proj_pred_pallas(x, params, matmul_dtype=jnp.bfloat16, max_tile_n=512):
    """x: (N, C) rows -> (proj, pred), each (N, C) float32."""
    N, C = x.shape
    H = params["w1p"].shape[1]

    # Pad N instead of asserting; use the largest row tile that keeps one
    # (or a small, even) grid.
    n_pad = max(8, -(-N // 8) * 8)
    if n_pad <= max_tile_n:
        tile_n = n_pad                                        # grid = 1
    else:
        tile_n = max_tile_n
        n_pad = -(-N // tile_n) * tile_n
    if n_pad != N:
        x = jnp.concatenate([x, jnp.zeros((n_pad - N, C), x.dtype)], axis=0)

    xc = x.astype(matmul_dtype)
    w = lambda k: params[k].astype(matmul_dtype)              # MXU operands
    b = lambda k: params[k].astype(jnp.float32)               # biases stay f32

    full = lambda i: (0, 0)
    proj, pred = pl.pallas_call(
        _mlp_proj_pred_kernel,
        out_shape=(jax.ShapeDtypeStruct((n_pad, C), jnp.float32),
                   jax.ShapeDtypeStruct((n_pad, C), jnp.float32)),
        grid=(n_pad // tile_n,),
        in_specs=[pl.BlockSpec((tile_n, C), lambda i: (i, 0)),
                  pl.BlockSpec((C, H), full), pl.BlockSpec((1, H), full),
                  pl.BlockSpec((H, C), full), pl.BlockSpec((1, C), full),
                  pl.BlockSpec((C, H), full), pl.BlockSpec((1, H), full),
                  pl.BlockSpec((H, C), full), pl.BlockSpec((1, C), full)],
        out_specs=(pl.BlockSpec((tile_n, C), lambda i: (i, 0)),
                   pl.BlockSpec((tile_n, C), lambda i: (i, 0))),
        compiler_params=pltpu.CompilerParams(
            dimension_semantics=("parallel",)),
    )(xc, w("w1p"), b("b1p"), w("w2p"), b("b2p"),
      w("w1q"), b("b1q"), w("w2q"), b("b2q"))
    return proj[:N], pred[:N]


# ----------------------------------------------------------------------------
# Kernel 2: batched contrastive-loss reduction over all (pred, proj) pairs
#   sums[p] = sum_i < pred_p_i / max(||pred_p_i||, eps),
#                     proj_p_i / max(||proj_p_i||, eps) >
# ----------------------------------------------------------------------------
def _contra_sums_kernel(pred_ref, proj_ref, o_ref):
    # pred_ref / proj_ref: (P, M, C) f32 VMEM; o_ref: (1, P) f32 SMEM.
    eps2 = 1e-24                                   # F.normalize eps=1e-12, squared
    num_pairs = pred_ref.shape[0]
    for p in range(num_pairs):                     # P is tiny; unrolled at trace
        pp = pred_ref[p]                           # (M, C)
        zz = proj_ref[p]
        dots = jnp.sum(pp * zz, axis=1, keepdims=True)          # (M, 1)
        psq = jnp.sum(pp * pp, axis=1, keepdims=True)
        zsq = jnp.sum(zz * zz, axis=1, keepdims=True)
        scale = (lax.rsqrt(jnp.maximum(psq, eps2)) *
                 lax.rsqrt(jnp.maximum(zsq, eps2)))
        o_ref[0, p] = jnp.sum(dots * scale)


def loss_contra_sums_pallas(pred_stack, proj_stack):
    """(P, M, C) pair stacks -> per-pair normalized-dot sums, shape (P,)."""
    P, M, C = pred_stack.shape
    sums = pl.pallas_call(
        _contra_sums_kernel,
        out_shape=jax.ShapeDtypeStruct((1, P), jnp.float32),
        grid=(1,),
        in_specs=[pl.BlockSpec((P, M, C), lambda i: (0, 0, 0)),
                  pl.BlockSpec((P, M, C), lambda i: (0, 0, 0))],
        out_specs=pl.BlockSpec(memory_space=pltpu.SMEM),
    )(pred_stack.astype(jnp.float32), proj_stack.astype(jnp.float32))
    return sums[0]


# ----------------------------------------------------------------------------
# Glue (index bookkeeping, gathers) in plain JAX
# ----------------------------------------------------------------------------
def resort_matched_indices(indices_v1, indices_v2):
    new_indices = []
    for (src_v1, tgt_v1), (src_v2, tgt_v2) in zip(indices_v1, indices_v2):
        sort_idx = jnp.argsort(tgt_v2)
        new_indices.append((src_v2[sort_idx][tgt_v1], tgt_v1))
    return new_indices


def _gather_matched(hs, query_idx_list):
    # hs: (L, B, Q, C); per-image query indices of length K -> (L, B, K, C).
    stacked = jnp.stack([hs[:, i, query_idx_list[i]]
                         for i in range(hs.shape[1])])        # (B, L, K, C)
    return jnp.transpose(stacked, (1, 0, 2, 3))               # (L, B, K, C)


def siamdetr_decoder_local_latent_head_forward(hs_v1, hs_v2,
                                               indices_v1, indices_v2,
                                               params,
                                               size_average=True,
                                               aux_loss=False,
                                               use_pallas=True,
                                               matmul_dtype=jnp.bfloat16):
    # Tiny data-dependent index bookkeeping stays in plain JAX.
    new_indices_v2 = resort_matched_indices(indices_v1, indices_v2)
    idx_v1 = [v1[0] for v1 in indices_v1]
    idx_v2 = [v2[0] for v2 in new_indices_v2]

    # Gather matched queries BEFORE the MLPs (forward losses unchanged).
    hs_v1_g = _gather_matched(hs_v1, idx_v1)                  # (L, B, K, C)
    hs_v2_g = _gather_matched(hs_v2, idx_v2)
    if not aux_loss:                                          # only last layer feeds loss
        hs_v1_g = hs_v1_g[-1:]
        hs_v2_g = hs_v2_g[-1:]
    Lu, B, K, C = hs_v1_g.shape
    M = B * K

    # One fused projector+predictor call for both views and all used layers.
    x = jnp.concatenate([hs_v1_g.reshape(-1, C),
                         hs_v2_g.reshape(-1, C)], axis=0)     # (2*Lu*M, C)
    if use_pallas:
        proj, pred = proj_pred_pallas(x, params, matmul_dtype=matmul_dtype)
    else:
        proj, pred = _proj_pred_ref(x, params, matmul_dtype=matmul_dtype)
    proj = proj.reshape(2, Lu, M, C)
    pred = pred.reshape(2, Lu, M, C)
    proj_v1, proj_v2 = proj[0], proj[1]
    pred_v1, pred_v2 = pred[0], pred[1]
    proj_v1_d = lax.stop_gradient(proj_v1)                    # .clone().detach()
    proj_v2_d = lax.stop_gradient(proj_v2)

    # Batch every (pred, detached proj) pair into ONE reduction kernel call.
    layer_order = [Lu - 1] + list(range(Lu - 1))              # main-loss layer first
    pred_pairs, proj_pairs = [], []
    for li in layer_order:
        pred_pairs += [pred_v1[li], pred_v2[li]]
        proj_pairs += [proj_v2_d[li], proj_v1_d[li]]
    pred_stack = jnp.stack(pred_pairs)                        # (P, M, C), P = 2*Lu
    proj_stack = jnp.stack(proj_pairs)

    if use_pallas:
        sums = loss_contra_sums_pallas(pred_stack, proj_stack)
    else:
        sums = _loss_contra_sums_ref(pred_stack, proj_stack)

    # loss_contra(p, z) = 2 - 2*sum/M (size_average) or 2 - 2*sum.
    pair_losses = 2.0 - (2.0 * sums / M if size_average else 2.0 * sums)
    layer_losses = 0.5 * pair_losses[0::2] + 0.5 * pair_losses[1::2]

    losses = {"loss_dec_local_contra": layer_losses[0]}
    if aux_loss:
        for i in range(Lu - 1):
            losses[f"loss_dec_local_contra_{i}"] = layer_losses[1 + i]
    return losses


# ----------------------------------------------------------------------------
# Pure-JAX references (for correctness checks)
# ----------------------------------------------------------------------------
def _proj_pred_ref(x, params, matmul_dtype=jnp.float32):
    md = matmul_dtype
    h1 = jnp.maximum(
        jnp.dot(x.astype(md), params["w1p"].astype(md),
                preferred_element_type=jnp.float32)
        + params["b1p"].astype(jnp.float32), 0.0)
    proj = (jnp.dot(h1.astype(md), params["w2p"].astype(md),
                    preferred_element_type=jnp.float32)
            + params["b2p"].astype(jnp.float32))
    h2 = jnp.maximum(
        jnp.dot(proj.astype(md), params["w1q"].astype(md),
                preferred_element_type=jnp.float32)
        + params["b1q"].astype(jnp.float32), 0.0)
    pred = (jnp.dot(h2.astype(md), params["w2q"].astype(md),
                    preferred_element_type=jnp.float32)
            + params["b2q"].astype(jnp.float32))
    return proj, pred


def _loss_contra_sums_ref(pred_stack, proj_stack):
    eps = 1e-12
    p = pred_stack.astype(jnp.float32)
    z = proj_stack.astype(jnp.float32)
    pn = p / jnp.maximum(jnp.linalg.norm(p, axis=-1, keepdims=True), eps)
    zn = z / jnp.maximum(jnp.linalg.norm(z, axis=-1, keepdims=True), eps)
    return jnp.sum(pn * zn, axis=(1, 2))


# ----------------------------------------------------------------------------
# Main
# ----------------------------------------------------------------------------
if __name__ == "__main__":
    key = jax.random.PRNGKey(0)
    L, B, Q, C, H, K = 3, 2, 16, 32, 64, 4   # layers, batch, queries, hidden, mlp-hid, matches
    keys = jax.random.split(key, 16)

    params = {
        "w1p": 0.1 * jax.random.normal(keys[0], (C, H), jnp.float32),
        "b1p": 0.01 * jax.random.normal(keys[1], (1, H), jnp.float32),
        "w2p": 0.1 * jax.random.normal(keys[2], (H, C), jnp.float32),
        "b2p": 0.01 * jax.random.normal(keys[3], (1, C), jnp.float32),
        "w1q": 0.1 * jax.random.normal(keys[4], (C, H), jnp.float32),
        "b1q": 0.01 * jax.random.normal(keys[5], (1, H), jnp.float32),
        "w2q": 0.1 * jax.random.normal(keys[6], (H, C), jnp.float32),
        "b2q": 0.01 * jax.random.normal(keys[7], (1, C), jnp.float32),
    }

    hs_v1 = jax.random.normal(keys[8], (L, B, Q, C), jnp.float32)
    hs_v2 = jax.random.normal(keys[9], (L, B, Q, C), jnp.float32)

    # Hungarian-matcher style indices: per image, (query_idx, target_idx).
    indices_v1, indices_v2 = [], []
    for i in range(B):
        k1, k2, k3, k4 = jax.random.split(keys[10 + i], 4)
        indices_v1.append((jax.random.permutation(k1, Q)[:K],
                           jax.random.permutation(k2, K)))
        indices_v2.append((jax.random.permutation(k3, Q)[:K],
                           jax.random.permutation(k4, K)))

    for aux in (False, True):
        losses = siamdetr_decoder_local_latent_head_forward(
            hs_v1, hs_v2, indices_v1, indices_v2, params,
            aux_loss=aux, use_pallas=True)
        losses = {k: jax.block_until_ready(v) for k, v in losses.items()}

        # Tight check: pure-JAX reference with identical bf16/f32 numerics.
        ref_bf16 = siamdetr_decoder_local_latent_head_forward(
            hs_v1, hs_v2, indices_v1, indices_v2, params,
            aux_loss=aux, use_pallas=False, matmul_dtype=jnp.bfloat16)
        # Loose sanity check vs. full-f32 (original-module) numerics.
        ref_f32 = siamdetr_decoder_local_latent_head_forward(
            hs_v1, hs_v2, indices_v1, indices_v2, params,
            aux_loss=aux, use_pallas=False, matmul_dtype=jnp.float32)

        for k in losses:
            assert jnp.allclose(losses[k], ref_bf16[k], rtol=1e-3, atol=1e-3), (
                "pallas vs bf16 ref", k, losses[k], ref_bf16[k])
            assert jnp.allclose(losses[k], ref_f32[k], rtol=0.0, atol=5e-2), (
                "pallas vs f32 ref", k, losses[k], ref_f32[k])

    print("KERNEL_OK")
</pallas_src>

<mosaic_0001>
module attributes {stable_mosaic.version = 11 : i64} {
  func.func @_mlp_proj_pred_kernel(%arg0: i32, %arg1: memref<16x32xbf16, #tpu.memory_space<vmem>>, %arg2: memref<32x64xbf16, #tpu.memory_space<vmem>>, %arg3: memref<1x64xf32, #tpu.memory_space<vmem>>, %arg4: memref<64x32xbf16, #tpu.memory_space<vmem>>, %arg5: memref<1x32xf32, #tpu.memory_space<vmem>>, %arg6: memref<32x64xbf16, #tpu.memory_space<vmem>>, %arg7: memref<1x64xf32, #tpu.memory_space<vmem>>, %arg8: memref<64x32xbf16, #tpu.memory_space<vmem>>, %arg9: memref<1x32xf32, #tpu.memory_space<vmem>>, %arg10: memref<16x32xf32, #tpu.memory_space<vmem>>, %arg11: memref<16x32xf32, #tpu.memory_space<vmem>>) attributes {dimension_semantics = [#tpu.dimension_semantics<parallel>], iteration_bounds = array<i64: 1>, scalar_prefetch = 0 : i64, scratch_operands = 0 : i64, tpu.core_type = #tpu.core_type<tc>, window_params = [{transform_indices = @transform_0, window_bounds = array<i64: 16, 32>}, {pipeline_mode = #tpu.pipeline_mode<synchronous>, transform_indices = @transform_1, window_bounds = array<i64: 32, 64>}, {pipeline_mode = #tpu.pipeline_mode<synchronous>, transform_indices = @transform_2, window_bounds = array<i64: 1, 64>}, {pipeline_mode = #tpu.pipeline_mode<synchronous>, transform_indices = @transform_3, window_bounds = array<i64: 64, 32>}, {pipeline_mode = #tpu.pipeline_mode<synchronous>, transform_indices = @transform_4, window_bounds = array<i64: 1, 32>}, {pipeline_mode = #tpu.pipeline_mode<synchronous>, transform_indices = @transform_5, window_bounds = array<i64: 32, 64>}, {pipeline_mode = #tpu.pipeline_mode<synchronous>, transform_indices = @transform_6, window_bounds = array<i64: 1, 64>}, {pipeline_mode = #tpu.pipeline_mode<synchronous>, transform_indices = @transform_7, window_bounds = array<i64: 64, 32>}, {pipeline_mode = #tpu.pipeline_mode<synchronous>, transform_indices = @transform_8, window_bounds = array<i64: 1, 32>}, {transform_indices = @transform_9, window_bounds = array<i64: 16, 32>}, {transform_indices = @transform_10, window_bounds = array<i64: 16, 32>}]} {
    %c0 = arith.constant 0 : index
    %c0_0 = arith.constant 0 : index
    %0 = vector.load %arg1[%c0, %c0_0] : memref<16x32xbf16, #tpu.memory_space<vmem>>, vector<16x32xbf16>
    %c0_1 = arith.constant 0 : index
    %c0_2 = arith.constant 0 : index
    %1 = vector.load %arg2[%c0_1, %c0_2] : memref<32x64xbf16, #tpu.memory_space<vmem>>, vector<32x64xbf16>
    %cst = arith.constant dense<0.000000e+00> : vector<16x64xf32>
    %2 = tpu.matmul %0, %1, %cst {dimension_numbers = #tpu.dot_dimension_numbers<[1], [0], [0], [1], [0, 0, 1, 1], [], []>} : vector<16x32xbf16>, vector<32x64xbf16>, vector<16x64xf32> -> vector<16x64xf32>
    %c0_3 = arith.constant 0 : index
    %c0_4 = arith.constant 0 : index
    %3 = vector.load %arg3[%c0_3, %c0_4] : memref<1x64xf32, #tpu.memory_space<vmem>>, vector<1x64xf32>
    %4 = vector.broadcast %3 : vector<1x64xf32> to vector<16x64xf32>
    %5 = arith.addf %2, %4 : vector<16x64xf32>
    %cst_5 = arith.constant 0.000000e+00 : f32
    %6 = vector.broadcast %cst_5 : f32 to vector<16x64xf32>
    %7 = arith.maximumf %5, %6 : vector<16x64xf32>
    %8 = arith.truncf %7 : vector<16x64xf32> to vector<16x64xbf16>
    %c0_6 = arith.constant 0 : index
    %c0_7 = arith.constant 0 : index
    %9 = vector.load %arg4[%c0_6, %c0_7] : memref<64x32xbf16, #tpu.memory_space<vmem>>, vector<64x32xbf16>
    %cst_8 = arith.constant dense<0.000000e+00> : vector<16x32xf32>
    %10 = tpu.matmul %8, %9, %cst_8 {dimension_numbers = #tpu.dot_dimension_numbers<[1], [0], [0], [1], [0, 0, 1, 1], [], []>} : vector<16x64xbf16>, vector<64x32xbf16>, vector<16x32xf32> -> vector<16x32xf32>
    %c0_9 = arith.constant 0 : index
    %c0_10 = arith.constant 0 : index
    %11 = vector.load %arg5[%c0_9, %c0_10] : memref<1x32xf32, #tpu.memory_space<vmem>>, vector<1x32xf32>
    %12 = vector.broadcast %11 : vector<1x32xf32> to vector<16x32xf32>
    %13 = arith.addf %10, %12 : vector<16x32xf32>
    %14 = arith.truncf %13 : vector<16x32xf32> to vector<16x32xbf16>
    %c0_11 = arith.constant 0 : index
    %c0_12 = arith.constant 0 : index
    %15 = vector.load %arg6[%c0_11, %c0_12] : memref<32x64xbf16, #tpu.memory_space<vmem>>, vector<32x64xbf16>
    %cst_13 = arith.constant dense<0.000000e+00> : vector<16x64xf32>
    %16 = tpu.matmul %14, %15, %cst_13 {dimension_numbers = #tpu.dot_dimension_numbers<[1], [0], [0], [1], [0, 0, 1, 1], [], []>} : vector<16x32xbf16>, vector<32x64xbf16>, vector<16x64xf32> -> vector<16x64xf32>
    %c0_14 = arith.constant 0 : index
    %c0_15 = arith.constant 0 : index
    %17 = vector.load %arg7[%c0_14, %c0_15] : memref<1x64xf32, #tpu.memory_space<vmem>>, vector<1x64xf32>
    %18 = vector.broadcast %17 : vector<1x64xf32> to vector<16x64xf32>
    %19 = arith.addf %16, %18 : vector<16x64xf32>
    %cst_16 = arith.constant 0.000000e+00 : f32
    %20 = vector.broadcast %cst_16 : f32 to vector<16x64xf32>
    %21 = arith.maximumf %19, %20 : vector<16x64xf32>
    %22 = arith.truncf %21 : vector<16x64xf32> to vector<16x64xbf16>
    %c0_17 = arith.constant 0 : index
    %c0_18 = arith.constant 0 : index
    %23 = vector.load %arg8[%c0_17, %c0_18] : memref<64x32xbf16, #tpu.memory_space<vmem>>, vector<64x32xbf16>
    %cst_19 = arith.constant dense<0.000000e+00> : vector<16x32xf32>
    %24 = tpu.matmul %22, %23, %cst_19 {dimension_numbers = #tpu.dot_dimension_numbers<[1], [0], [0], [1], [0, 0, 1, 1], [], []>} : vector<16x64xbf16>, vector<64x32xbf16>, vector<16x32xf32> -> vector<16x32xf32>
    %c0_20 = arith.constant 0 : index
    %c0_21 = arith.constant 0 : index
    %25 = vector.load %arg9[%c0_20, %c0_21] : memref<1x32xf32, #tpu.memory_space<vmem>>, vector<1x32xf32>
    %26 = vector.broadcast %25 : vector<1x32xf32> to vector<16x32xf32>
    %27 = arith.addf %24, %26 : vector<16x32xf32>
    %c0_22 = arith.constant 0 : index
    %c0_23 = arith.constant 0 : index
    %28 = vector.load %arg10[%c0_22, %c0_23] : memref<16x32xf32, #tpu.memory_space<vmem>>, vector<16x32xf32>
    tpu.vector_store %arg10[%c0_22, %c0_23], %13 {strides = array<i32>} : memref<16x32xf32, #tpu.memory_space<vmem>>, vector<16x32xf32>,
    %c0_24 = arith.constant 0 : index
    %c0_25 = arith.constant 0 : index
    %29 = vector.load %arg11[%c0_24, %c0_25] : memref<16x32xf32, #tpu.memory_space<vmem>>, vector<16x32xf32>
    tpu.vector_store %arg11[%c0_24, %c0_25], %27 {strides = array<i32>} : memref<16x32xf32, #tpu.memory_space<vmem>>, vector<16x32xf32>,
    return
  }
  func.func @transform_0(%arg0: i32) -> (i32, i32) {
    %c0_i32 = arith.constant 0 : i32
    %c0_i32_0 = arith.constant 0 : i32
    return %arg0, %c0_i32 : i32, i32
  }
  func.func @transform_1(%arg0: i32) -> (i32, i32) {
    %c0_i32 = arith.constant 0 : i32
    %c0_i32_0 = arith.constant 0 : i32
    %c0_i32_1 = arith.constant 0 : i32
    return %c0_i32, %c0_i32_0 : i32, i32
  }
  func.func @transform_2(%arg0: i32) -> (i32, i32) {
    %c0_i32 = arith.constant 0 : i32
    %c0_i32_0 = arith.constant 0 : i32
    %c0_i32_1 = arith.constant 0 : i32
    return %c0_i32, %c0_i32_0 : i32, i32
  }
  func.func @transform_3(%arg0: i32) -> (i32, i32) {
    %c0_i32 = arith.constant 0 : i32
    %c0_i32_0 = arith.constant 0 : i32
    %c0_i32_1 = arith.constant 0 : i32
    return %c0_i32, %c0_i32_0 : i32, i32
  }
  func.func @transform_4(%arg0: i32) -> (i32, i32) {
    %c0_i32 = arith.constant 0 : i32
    %c0_i32_0 = arith.constant 0 : i32
    %c0_i32_1 = arith.constant 0 : i32
    return %c0_i32, %c0_i32_0 : i32, i32
  }
  func.func @transform_5(%arg0: i32) -> (i32, i32) {
    %c0_i32 = arith.constant 0 : i32
    %c0_i32_0 = arith.constant 0 : i32
    %c0_i32_1 = arith.constant 0 : i32
    return %c0_i32, %c0_i32_0 : i32, i32
  }
  func.func @transform_6(%arg0: i32) -> (i32, i32) {
    %c0_i32 = arith.constant 0 : i32
    %c0_i32_0 = arith.constant 0 : i32
    %c0_i32_1 = arith.constant 0 : i32
    return %c0_i32, %c0_i32_0 : i32, i32
  }
  func.func @transform_7(%arg0: i32) -> (i32, i32) {
    %c0_i32 = arith.constant 0 : i32
    %c0_i32_0 = arith.constant 0 : i32
    %c0_i32_1 = arith.constant 0 : i32
    return %c0_i32, %c0_i32_0 : i32, i32
  }
  func.func @transform_8(%arg0: i32) -> (i32, i32) {
    %c0_i32 = arith.constant 0 : i32
    %c0_i32_0 = arith.constant 0 : i32
    %c0_i32_1 = arith.constant 0 : i32
    return %c0_i32, %c0_i32_0 : i32, i32
  }
  func.func @transform_9(%arg0: i32) -> (i32, i32) {
    %c0_i32 = arith.constant 0 : i32
    %c0_i32_0 = arith.constant 0 : i32
    return %arg0, %c0_i32 : i32, i32
  }
  func.func @transform_10(%arg0: i32) -> (i32, i32) {
    %c0_i32 = arith.constant 0 : i32
    %c0_i32_0 = arith.constant 0 : i32
    return %arg0, %c0_i32 : i32, i32
  }
}

</mosaic_0001>

<llo_original>
// kernel: tpu_custom_call.1
$region0: #{tpu_custom_call.1}
  #allocation0 [shape = 'u32[]', space=smem, size = 0x4, offset = 0x4, fixed_abs, tag = 'smem constant byte address 0x4 - core index']
  #allocation1 [shape = 'u32[72,128]{1,0:T(1,128)}', space=vmem, size = 0x9000, scoped, tag = 'internal scratch']
  %s0 = inlined_call_operand.vmem [shape: bf16[16,32], index: 0, kind: input, shape index: {}]
  %s1 = inlined_call_operand.vmem [shape: bf16[32,64], index: 1, kind: input, shape index: {}]
  %s2 = inlined_call_operand.vmem [shape: f32[1,64], index: 2, kind: input, shape index: {}]
  %s3 = inlined_call_operand.vmem [shape: bf16[64,32], index: 3, kind: input, shape index: {}]
  %s4 = inlined_call_operand.vmem [shape: f32[1,32], index: 4, kind: input, shape index: {}]
  %s5 = inlined_call_operand.vmem [shape: bf16[32,64], index: 5, kind: input, shape index: {}]
  %s6 = inlined_call_operand.vmem [shape: f32[1,64], index: 6, kind: input, shape index: {}]
  %s7 = inlined_call_operand.vmem [shape: bf16[64,32], index: 7, kind: input, shape index: {}]
  %s8 = inlined_call_operand.vmem [shape: f32[1,32], index: 8, kind: input, shape index: {}]
  %s9 = inlined_call_operand.hbm [shape: f32[16,32], index: 9, kind: output, shape index: {0}]
  %s10 = inlined_call_operand.hbm [shape: f32[16,32], index: 10, kind: output, shape index: {1}]
  %11 = xla_tuple %s9, %s10
  %s12 = sld [smem:[#allocation0]]
  $region54: #{tpu_custom_call.1} parent=0
    _
  %s14 = ssub.s32 1, %s12
  %s15 = scalar_select 0, %s14, %s12
  $region1: #{tpu_custom_call.1} parent=0
    #allocation2 [shape = 'u8[8192]{0}', space=vmem, size = 0x2000, scoped, tag = 'output window, operand 0, single buffered']
    #allocation3 [shape = 's32[1]{0}', space=sflag, size = 0x4, scoped, tag = 'scoped memory for tpu_custom_call.1']
    #allocation4 [shape = 'u8[8192]{0}', space=vmem, size = 0x2000, scoped, tag = 'output window, operand 1, single buffered']
    #allocation5 [shape = 's32[1]{0}', space=sflag, size = 0x4, scoped, tag = 'scoped memory for tpu_custom_call.1']
    %16 = vsyncpa [#allocation3], 0
    %17 = vsyncpa [#allocation5], 0
    // Predicated region
    $region2: #{tpu_custom_call.1} parent=1 // pred_check
      _
    $region3: #{tpu_custom_call.1} parent=1 // pred_check_branch
      %19 = sbr.rel (0) target = $region5
    $region4: #{tpu_custom_call.1} parent=1 // pred_region
      _
    $region5: #{tpu_custom_call.1} parent=1 // pred_fallthru
      _
    // Predicated region
    $region6: #{tpu_custom_call.1} parent=1 // pred_check
      _
    $region7: #{tpu_custom_call.1} parent=1 // pred_check_branch
      %21 = sbr.rel (0) target = $region9
    $region8: #{tpu_custom_call.1} parent=1 // pred_region
      _
    $region9: #{tpu_custom_call.1} parent=1 // pred_fallthru
      _
    // Predicated region
    $region10: #{tpu_custom_call.1} parent=1 // pred_check
      _
    $region11: #{tpu_custom_call.1} parent=1 // pred_check_branch
      %23 = sbr.rel (0) target = $region13
    $region12: #{tpu_custom_call.1} parent=1 // pred_region
      _
    $region13: #{tpu_custom_call.1} parent=1 // pred_fallthru
      _
    // Predicated region
    $region14: #{tpu_custom_call.1} parent=1 // pred_check
      _
    $region15: #{tpu_custom_call.1} parent=1 // pred_check_branch
      %25 = sbr.rel (0) target = $region17
    $region16: #{tpu_custom_call.1} parent=1 // pred_region
      _
    $region17: #{tpu_custom_call.1} parent=1 // pred_fallthru
      _
    // Predicated region
    $region18: #{tpu_custom_call.1} parent=1 // pred_check
      _
    $region19: #{tpu_custom_call.1} parent=1 // pred_check_branch
      %27 = sbr.rel (0) target = $region21
    $region20: #{tpu_custom_call.1} parent=1 // pred_region
      _
    $region21: #{tpu_custom_call.1} parent=1 // pred_fallthru
      _
    // Predicated region
    $region22: #{tpu_custom_call.1} parent=1 // pred_check
      _
    $region23: #{tpu_custom_call.1} parent=1 // pred_check_branch
      %29 = sbr.rel (0) target = $region25
    $region24: #{tpu_custom_call.1} parent=1 // pred_region
      _
    $region25: #{tpu_custom_call.1} parent=1 // pred_fallthru
      _
    // Predicated region
    $region26: #{tpu_custom_call.1} parent=1 // pred_check
      _
    $region27: #{tpu_custom_call.1} parent=1 // pred_check_branch
      %31 = sbr.rel (0) target = $region29
    $region28: #{tpu_custom_call.1} parent=1 // pred_region
      _
    $region29: #{tpu_custom_call.1} parent=1 // pred_fallthru
      _
    // Predicated region
    $region30: #{tpu_custom_call.1} parent=1 // pred_check
      _
    $region31: #{tpu_custom_call.1} parent=1 // pred_check_branch
      %33 = sbr.rel (0) target = $region33
    $region32: #{tpu_custom_call.1} parent=1 // pred_region
      _
    $region33: #{tpu_custom_call.1} parent=1 // pred_fallthru
      _
    // Predicated region
    $region34: #{tpu_custom_call.1} parent=1 // pred_check
      _
    $region35: #{tpu_custom_call.1} parent=1 // pred_check_branch
      %35 = sbr.rel (0) target = $region37
    $region36: #{tpu_custom_call.1} parent=1 // pred_region
      _
    $region37: #{tpu_custom_call.1} parent=1 // pred_fallthru
      _
    %v37 = vld [vmem:[%s0] sm:$0xf]
    %v38 = vld [vmem:[%s0 + $0x4] sm:$0xf]
    %v39 = vld [vmem:[%s1] sm:$0xf]
    %v40 = vld [vmem:[%s1 + $0x4] sm:$0xf]
    %v41 = vld [vmem:[%s1 + $0x8] sm:$0xf]
    %v42 = vld [vmem:[%s1 + $0xc] sm:$0xf]
    %v43 = vld [vmem:[%s2] sm:$0x1]
    %v45 = vperm.slane %v43, 0
    %v49 = vunpack.c.l.b16 %v37
    %v50 = vunpack.c.l.b16 %v38
    %v51 = vpack.c.b16 %v50, %v49
    %v56 = vunpack.c.l.b16 %v39
    %v57 = vunpack.c.l.b16 %v40
    %v58 = vunpack.c.l.b16 %v41
    %v59 = vunpack.c.l.b16 %v42
    %v60 = vpack.c.b16 %v57, %v56
    %v61 = vpack.c.b16 %v59, %v58
    %vm64 = vcmask 261120
    %v66 = vsel %vm64, %v51, 0
    %68 = vmatpush.bf16.msra.mxu0 0
    %69 = vmatpush.bf16.msra.mxu0 0
    %70 = vmatpush.bf16.msra.mxu0 0
    %71 = vmatpush.bf16.msra.mxu0 0
    %72 = vmatpush.bf16.msra.mxu0 0
    %73 = vmatpush.bf16.msra.mxu0 0
    %74 = vmatpush.bf16.msra.mxu0 %v61
    %75 = vmatpush.bf16.msra.mxu0 %v60
    %76 = vmatmul.bf16.gmra.mxu0 %v66
    %v77 = vpop.f32.mrf.mxu0
    %v78 = vadd.f32 %v45, %v77
    %v79 = vpop.f32.mrf.mxu0
    %v80 = vadd.f32 %v45, %v79
    %81 = vdwg.mxu0
    %v82 = vmax.f32 %v78, 0.0
    %v83 = vmax.f32 %v80, 0.0
    %v84 = vpack.c.bf16 %v83, %v82
    %v85 = vld [vmem:[%s3] sm:$0xf]
    %v86 = vld [vmem:[%s3 + $0x4] sm:$0xf]
    %v87 = vld [vmem:[%s3 + $0x8] sm:$0xf]
    %v88 = vld [vmem:[%s3 + $0xc] sm:$0xf]
    %v89 = vld [vmem:[%s3 + $0x10] sm:$0xf]
    %v90 = vld [vmem:[%s3 + $0x14] sm:$0xf]
    %v91 = vld [vmem:[%s3 + $0x18] sm:$0xf]
    %v92 = vld [vmem:[%s3 + $0x1c] sm:$0xf]
    %v93 = vld [vmem:[%s4] sm:$0x1]
    %v95 = vperm.slane %v93, 0
    %v105 = vunpack.c.l.b16 %v85
    %v106 = vunpack.c.l.b16 %v86
    %v107 = vunpack.c.l.b16 %v87
    %v108 = vunpack.c.l.b16 %v88
    %v109 = vunpack.c.l.b16 %v89
    %v110 = vunpack.c.l.b16 %v90
    %v111 = vunpack.c.l.b16 %v91
    %v112 = vunpack.c.l.b16 %v92
    %v113 = vpack.c.b16 %v106, %v105
    %v114 = vpack.c.b16 %v108, %v107
    %v115 = vpack.c.b16 %v110, %v109
    %v116 = vpack.c.b16 %v112, %v111
    %vm121 = vcmask 523264
    %v123 = vsel %vm121, %v84, 0
    %125 = vmatpush.bf16.msra.mxu0 0
    %126 = vmatpush.bf16.msra.mxu0 0
    %127 = vmatpush.bf16.msra.mxu0 0
    %128 = vmatpush.bf16.msra.mxu0 0
    %129 = vmatpush.bf16.msra.mxu0 %v116
    %130 = vmatpush.bf16.msra.mxu0 %v115
    %131 = vmatpush.bf16.msra.mxu0 %v114
    %132 = vmatpush.bf16.msra.mxu0 %v113
    %133 = vmatmul.bf16.gmra.mxu0 %v123
    %v134 = vpop.f32.mrf.mxu0
    %v135 = vadd.f32 %v95, %v134
    %v136 = vpop.f32.mrf.mxu0
    %v137 = vadd.f32 %v95, %v136
    %138 = vdwg.mxu0
    %v139 = vpack.c.bf16 %v137, %v135
    %v140 = vld [vmem:[%s5] sm:$0xf]
    %v141 = vld [vmem:[%s5 + $0x4] sm:$0xf]
    %v142 = vld [vmem:[%s5 + $0x8] sm:$0xf]
    %v143 = vld [vmem:[%s5 + $0xc] sm:$0xf]
    %v144 = vld [vmem:[%s6] sm:$0x1]
    %v146 = vperm.slane %v144, 0
    %v152 = vunpack.c.l.b16 %v140
    %v153 = vunpack.c.l.b16 %v141
    %v154 = vunpack.c.l.b16 %v142
    %v155 = vunpack.c.l.b16 %v143
    %v156 = vpack.c.b16 %v153, %v152
    %v157 = vpack.c.b16 %v155, %v154
    %v161 = vsel %vm64, %v139, 0
    %163 = vmatpush.bf16.msra.mxu0 0
    %164 = vmatpush.bf16.msra.mxu0 0
    %165 = vmatpush.bf16.msra.mxu0 0
    %166 = vmatpush.bf16.msra.mxu0 0
    %167 = vmatpush.bf16.msra.mxu0 0
    %168 = vmatpush.bf16.msra.mxu0 0
    %169 = vmatpush.bf16.msra.mxu0 %v157
    %170 = vmatpush.bf16.msra.mxu0 %v156
    %171 = vmatmul.bf16.gmra.mxu0 %v161
    %v172 = vpop.f32.mrf.mxu0
    %v173 = vadd.f32 %v146, %v172
    %v174 = vpop.f32.mrf.mxu0
    %v175 = vadd.f32 %v146, %v174
    %176 = vdwg.mxu0
    %v177 = vmax.f32 %v173, 0.0
    %v178 = vmax.f32 %v175, 0.0
    %v179 = vpack.c.bf16 %v178, %v177
    %v180 = vld [vmem:[%s7] sm:$0xf]
    %v181 = vld [vmem:[%s7 + $0x4] sm:$0xf]
    %v182 = vld [vmem:[%s7 + $0x8] sm:$0xf]
    %v183 = vld [vmem:[%s7 + $0xc] sm:$0xf]
    %v184 = vld [vmem:[%s7 + $0x10] sm:$0xf]
    %v185 = vld [vmem:[%s7 + $0x14] sm:$0xf]
    %v186 = vld [vmem:[%s7 + $0x18] sm:$0xf]
    %v187 = vld [vmem:[%s7 + $0x1c] sm:$0xf]
    %v188 = vld [vmem:[%s8] sm:$0x1]
    %v190 = vperm.slane %v188, 0
    %v200 = vunpack.c.l.b16 %v180
    %v201 = vunpack.c.l.b16 %v181
    %v202 = vunpack.c.l.b16 %v182
    %v203 = vunpack.c.l.b16 %v183
    %v204 = vunpack.c.l.b16 %v184
    %v205 = vunpack.c.l.b16 %v185
    %v206 = vunpack.c.l.b16 %v186
    %v207 = vunpack.c.l.b16 %v187
    %v208 = vpack.c.b16 %v201, %v200
    %v209 = vpack.c.b16 %v203, %v202
    %v210 = vpack.c.b16 %v205, %v204
    %v211 = vpack.c.b16 %v207, %v206
    %v217 = vsel %vm121, %v179, 0
    %219 = vmatpush.bf16.msra.mxu0 0
    %220 = vmatpush.bf16.msra.mxu0 0
    %221 = vmatpush.bf16.msra.mxu0 0
    %222 = vmatpush.bf16.msra.mxu0 0
    %223 = vmatpush.bf16.msra.mxu0 %v211
    %224 = vmatpush.bf16.msra.mxu0 %v210
    %225 = vmatpush.bf16.msra.mxu0 %v209
    %226 = vmatpush.bf16.msra.mxu0 %v208
    %227 = vmatmul.bf16.gmra.mxu0 %v217
    %v228 = vpop.f32.mrf.mxu0
    %v229 = vadd.f32 %v190, %v228
    %v230 = vpop.f32.mrf.mxu0
    %v231 = vadd.f32 %v190, %v230
    %232 = vdwg.mxu0
    %233 = vst.msk [vmem:[#allocation2] sm:$0xff] %vm64, %v135
    %234 = vst.msk [vmem:[#allocation2 + $0x8] sm:$0xff] %vm64, %v137
    %235 = vst.msk [vmem:[#allocation4] sm:$0xff] %vm64, %v229
    %236 = vst.msk [vmem:[#allocation4 + $0x8] sm:$0xff] %vm64, %v231
    // Predicated region
    $region38: #{tpu_custom_call.1} parent=1 // pred_check
      _
    $region39: #{tpu_custom_call.1} parent=1 // pred_check_branch
      %238 = sbr.rel (0) target = $region41
    $region40: #{tpu_custom_call.1} parent=1 // pred_region
      %240 = vsyncadd [#allocation3], 0
      %s241 = sshll.u32 [#allocation2], 4
      %s242 = int_to_ptr.vmem [resolvable:$true] %s241
      %s243 = sshll.u32 %s9, 4
      %s244 = int_to_ptr.hbm [resolvable:$true] %s243
      %249 = dma.vmem_to_hbm [thread:$0]  %s242, 256, %s244, [#allocation3], 128, 128, 8
    $region41: #{tpu_custom_call.1} parent=1 // pred_fallthru
      _
    // Predicated region
    $region42: #{tpu_custom_call.1} parent=1 // pred_check
      _
    $region43: #{tpu_custom_call.1} parent=1 // pred_check_branch
      %251 = sbr.rel (0) target = $region45
    $region44: #{tpu_custom_call.1} parent=1 // pred_region
      %253 = vsyncadd [#allocation5], 0
      %s254 = sshll.u32 [#allocation4], 4
      %s255 = int_to_ptr.vmem [resolvable:$true] %s254
      %s256 = sshll.u32 %s10, 4
      %s257 = int_to_ptr.hbm [resolvable:$true] %s256
      %262 = dma.vmem_to_hbm [thread:$0]  %s255, 256, %s257, [#allocation5], 128, 128, 8
    $region45: #{tpu_custom_call.1} parent=1 // pred_fallthru
      _
    // Predicated region
    $region46: #{tpu_custom_call.1} parent=1 // pred_check
      _
    $region47: #{tpu_custom_call.1} parent=1 // pred_check_branch
      %264 = sbr.rel (0) target = $region49
    $region48: #{tpu_custom_call.1} parent=1 // pred_region
      %266 = dma.done [#allocation3], 256
    $region49: #{tpu_custom_call.1} parent=1 // pred_fallthru
      _
    // Predicated region
    $region50: #{tpu_custom_call.1} parent=1 // pred_check
      _
    $region51: #{tpu_custom_call.1} parent=1 // pred_check_branch
      %268 = sbr.rel (0) target = $region53
    $region52: #{tpu_custom_call.1} parent=1 // pred_region
      %270 = dma.done [#allocation5], 256
    $region53: #{tpu_custom_call.1} parent=1 // pred_fallthru
      _
    %271 = vsyncpa [#allocation3], 1
    %272 = vsyncpa [#allocation5], 1

</llo_original>
